<compile_context>
chip_gen: v7x
topology: tpu7x:2x2x1
jax: 0.10.0
libtpu: 0.0.40
codegen_flags: <defaults>
</compile_context>

<pallas_src>
import jax
import jax.numpy as jnp
from jax.experimental import pallas as pl
from jax.experimental.pallas import tpu as pltpu


def _round_up(v, m):
    return ((v + m - 1) // m) * m


def _sublane_pad(rows, itemsize):
    # Rows of the second-minor dim pad to a full sublane tile:
    # 8 for 4-byte, 16 for 2-byte, 32 for 1-byte dtypes.
    return _round_up(max(rows, 1), 32 // itemsize)


def _tile_bytes(b_blk, t_hw, cin, cout, elt):
    """Approximate VMEM footprint of one grid step (with double buffering)."""
    in_b = b_blk * _sublane_pad(cin, elt) * t_hw * elt
    out_b = b_blk * _sublane_pad(cout, elt) * t_hw * elt
    # f32 accumulator materialized before the cast when output dtype < 4 bytes.
    acc_b = b_blk * _sublane_pad(cout, 4) * t_hw * 4 if elt < 4 else 0
    # Resident (double-buffered) weight + bias; tiny at these channel counts.
    wb_b = 2 * (_sublane_pad(cout, elt) * _round_up(cin, 128)
                + _sublane_pad(cout, elt) * 128) * elt
    return 2 * (in_b + out_b) + acc_b + wb_b


def _choose_tiling(N, cin, cout, HW, elt, vmem_budget,
                   t_hw_cap=32768, step_target_bytes=1 << 20,
                   min_parallel=4, max_b_blk=32):
    """Pick (b_blk, t_hw): big steps to beat the ~0.35us/step floor, but keep a
    few parallel steps alive for megacore and stay inside the VMEM budget."""
    # ---- pixel tile: whole H*W when it fits (legal even if HW % 128 != 0),
    #      otherwise a large multiple of 128 with a partial edge block. ----
    t_hw = HW if HW <= t_hw_cap else _round_up(t_hw_cap, 128)
    while t_hw > 128 and _tile_bytes(1, t_hw, cin, cout, elt) > vmem_budget:
        t_hw = max(128, _round_up(t_hw // 2, 128))
    hw_steps = pl.cdiv(HW, t_hw)

    # ---- batch block: grow (over divisors of N, capped for unroll size) until
    #      a step moves ~1 MiB, without starving the grid of parallel steps. ----
    def step_bytes(b):
        return b * (cin + cout) * t_hw * elt

    total_bytes = N * hw_steps * step_bytes(1)
    b_blk = 1
    for d in range(2, min(N, max_b_blk) + 1):
        if N % d:
            continue
        if _tile_bytes(d, t_hw, cin, cout, elt) > vmem_budget:
            break
        n_steps = (N // d) * hw_steps
        # Keep >= min_parallel grid steps for the two v7x TensorCores, unless
        # the whole problem is smaller than a single step's target anyway.
        if n_steps < min_parallel and total_bytes > step_target_bytes:
            break
        b_blk = d
        if step_bytes(d) >= step_target_bytes:
            break
    return b_blk, t_hw


def _outconv_kernel(x_ref, w_ref, b_ref, o_ref):
    # x_ref: (B_blk, Cin, T_HW), w_ref: (Cout, Cin), b_ref: (Cout, 1),
    # o_ref: (B_blk, Cout, T_HW).  1x1 conv == channel matmul per pixel.
    # Short static per-b unroll of MXU dots (B_blk is small by construction);
    # accumulate in f32, add bias in f32, cast back to the output dtype.
    w = w_ref[...]
    b = b_ref[...]
    for i in range(x_ref.shape[0]):
        acc = jnp.dot(w, x_ref[i], preferred_element_type=jnp.float32)
        o_ref[i] = (acc + b).astype(o_ref.dtype)


def out_conv_pallas(x_nchw, weight, bias, *, t_hw_cap=32768,
                    vmem_budget_bytes=16 * 1024 * 1024):
    """1x1 Conv2d. x_nchw: (N, Cin, H, W); weight: (Cout, Cin, 1, 1); bias: (Cout,)."""
    N, Cin, H, W = x_nchw.shape
    Cout = weight.shape[0]
    HW = H * W
    elt = x_nchw.dtype.itemsize

    # Glue: pure reshapes only (no transposes). Pixels land on the lane axis.
    x = x_nchw.reshape(N, Cin, HW)
    w = weight.reshape(Cout, Cin)
    b = bias.reshape(Cout, 1)

    b_blk, t_hw = _choose_tiling(N, Cin, Cout, HW, elt, vmem_budget_bytes,
                                 t_hw_cap=t_hw_cap)
    grid = (N // b_blk, pl.cdiv(HW, t_hw))

    cost = pl.CostEstimate(
        flops=2 * N * HW * Cin * Cout,
        transcendentals=0,
        bytes_accessed=elt * (N * HW * Cin + Cin * Cout + Cout + N * HW * Cout),
    )

    # Tight, honest VMEM reservation: actual double-buffered need + margin,
    # never above the 32 MiB scoped default (only raises v5e's 16 MiB default
    # when genuinely needed; never over-reserves on v7x's 64 MiB physical).
    vmem_need = _tile_bytes(b_blk, t_hw, Cin, Cout, elt)
    vmem_limit = int(min(32 * 1024 * 1024,
                         max(16 * 1024 * 1024, vmem_need + 2 * 1024 * 1024)))

    # TODO(synk): weight/bias are grid-invariant; pipeline_mode=pl.Buffered(1)
    # would single-buffer them (only matters once Cin/Cout grow large).
    y = pl.pallas_call(
        _outconv_kernel,
        out_shape=jax.ShapeDtypeStruct((N, Cout, HW), x.dtype),
        grid_spec=pltpu.PrefetchScalarGridSpec(
            num_scalar_prefetch=0,
            grid=grid,
            in_specs=[
                # (b_blk, Cin, t_hw) activation tile; partial edge block on the
                # pixel axis handles HW % t_hw != 0 without any pad/slice pass.
                pl.BlockSpec((b_blk, Cin, t_hw), lambda n, j: (n, 0, j)),
                # Full weight / bias, resident across the whole grid.
                pl.BlockSpec((Cout, Cin), lambda n, j: (0, 0)),
                pl.BlockSpec((Cout, 1), lambda n, j: (0, 0)),
            ],
            out_specs=pl.BlockSpec((b_blk, Cout, t_hw), lambda n, j: (n, 0, j)),
        ),
        compiler_params=pltpu.CompilerParams(
            # Both axes are embarrassingly parallel -> sharded across the two
            # TensorCores on v7x; neutral on v5e/v6e.
            dimension_semantics=("parallel", "parallel"),
            vmem_limit_bytes=vmem_limit,
        ),
        cost_estimate=cost,
    )(x, w, b)

    # Glue: (N, Cout, H*W) -> NCHW is again a pure reshape.
    return y.reshape(N, Cout, H, W)


if __name__ == "__main__":
    key = jax.random.PRNGKey(0)
    k_x, k_w, k_b = jax.random.split(key, 3)

    # Small shapes consistent with the module: batch=2, in_channels=4,
    # out_channels=8, spatial=16 (kernel_size=1, stride=1, padding=0).
    N, Cin, Cout, H, W = 2, 4, 8, 16, 16

    x = jax.random.normal(k_x, (N, Cin, H, W), dtype=jnp.float32)
    # Deterministic "Conv2d" parameters (shapes match nn.Conv2d(Cin, Cout, 1, 1, 0)).
    weight = jax.random.normal(k_w, (Cout, Cin, 1, 1), dtype=jnp.float32) * 0.1
    bias = jax.random.normal(k_b, (Cout,), dtype=jnp.float32) * 0.1

    y = out_conv_pallas(x, weight, bias)
    jax.block_until_ready(y)

    # Sanity check against a plain-JAX reference of the same 1x1 conv.
    ref = (jnp.einsum("nchw,oc->nohw", x, weight.reshape(Cout, Cin))
           + bias[None, :, None, None])
    assert y.shape == (N, Cout, H, W)
    assert jnp.allclose(y, ref, atol=1e-5, rtol=1e-5)

    print("KERNEL_OK")
</pallas_src>

<mosaic_0001>
module attributes {stable_mosaic.version = 11 : i64} {
  func.func @_outconv_kernel(%arg0: i32, %arg1: i32, %arg2: memref<2x4x256xf32, #tpu.memory_space<vmem>>, %arg3: memref<8x4xf32, #tpu.memory_space<vmem>>, %arg4: memref<8x1xf32, #tpu.memory_space<vmem>>, %arg5: memref<2x8x256xf32, #tpu.memory_space<vmem>>) attributes {dimension_semantics = [#tpu.dimension_semantics<parallel>, #tpu.dimension_semantics<parallel>], iteration_bounds = array<i64: 1, 1>, scalar_prefetch = 0 : i64, scratch_operands = 0 : i64, tpu.core_type = #tpu.core_type<tc>, window_params = [{transform_indices = @transform_0, window_bounds = array<i64: 2, 4, 256>}, {pipeline_mode = #tpu.pipeline_mode<synchronous>, transform_indices = @transform_1, window_bounds = array<i64: 8, 4>}, {pipeline_mode = #tpu.pipeline_mode<synchronous>, transform_indices = @transform_2, window_bounds = array<i64: 8, 1>}, {transform_indices = @transform_3, window_bounds = array<i64: 2, 8, 256>}]} {
    %c0 = arith.constant 0 : index
    %c0_0 = arith.constant 0 : index
    %0 = vector.load %arg3[%c0, %c0_0] : memref<8x4xf32, #tpu.memory_space<vmem>>, vector<8x4xf32>
    %c0_1 = arith.constant 0 : index
    %c0_2 = arith.constant 0 : index
    %1 = vector.load %arg4[%c0_1, %c0_2] : memref<8x1xf32, #tpu.memory_space<vmem>>, vector<8x1xf32>
    %c0_3 = arith.constant 0 : index
    %c0_4 = arith.constant 0 : index
    %c0_5 = arith.constant 0 : index
    %2 = vector.load %arg2[%c0_3, %c0_4, %c0_5] : memref<2x4x256xf32, #tpu.memory_space<vmem>>, vector<1x4x256xf32>
    %3 = vector.shape_cast %2 : vector<1x4x256xf32> to vector<4x256xf32>
    %cst = arith.constant dense<0.000000e+00> : vector<8x256xf32>
    %4 = tpu.matmul %0, %3, %cst {dimension_numbers = #tpu.dot_dimension_numbers<[1], [0], [0], [1], [0, 0, 1, 1], [], []>} : vector<8x4xf32>, vector<4x256xf32>, vector<8x256xf32> -> vector<8x256xf32>
    %5 = vector.broadcast %1 : vector<8x1xf32> to vector<8x256xf32>
    %6 = arith.addf %4, %5 : vector<8x256xf32>
    %c0_6 = arith.constant 0 : index
    %c0_7 = arith.constant 0 : index
    %c0_8 = arith.constant 0 : index
    %7 = vector.load %arg5[%c0_6, %c0_7, %c0_8] : memref<2x8x256xf32, #tpu.memory_space<vmem>>, vector<1x8x256xf32>
    %8 = vector.shape_cast %7 : vector<1x8x256xf32> to vector<8x256xf32>
    %9 = vector.shape_cast %6 : vector<8x256xf32> to vector<1x8x256xf32>
    tpu.vector_store %arg5[%c0_6, %c0_7, %c0_8], %9 {strides = array<i32>} : memref<2x8x256xf32, #tpu.memory_space<vmem>>, vector<1x8x256xf32>,
    %c1 = arith.constant 1 : index
    %c0_9 = arith.constant 0 : index
    %c0_10 = arith.constant 0 : index
    %10 = vector.load %arg2[%c1, %c0_9, %c0_10] : memref<2x4x256xf32, #tpu.memory_space<vmem>>, vector<1x4x256xf32>
    %11 = vector.shape_cast %10 : vector<1x4x256xf32> to vector<4x256xf32>
    %cst_11 = arith.constant dense<0.000000e+00> : vector<8x256xf32>
    %12 = tpu.matmul %0, %11, %cst_11 {dimension_numbers = #tpu.dot_dimension_numbers<[1], [0], [0], [1], [0, 0, 1, 1], [], []>} : vector<8x4xf32>, vector<4x256xf32>, vector<8x256xf32> -> vector<8x256xf32>
    %13 = vector.broadcast %1 : vector<8x1xf32> to vector<8x256xf32>
    %14 = arith.addf %12, %13 : vector<8x256xf32>
    %c1_12 = arith.constant 1 : index
    %c0_13 = arith.constant 0 : index
    %c0_14 = arith.constant 0 : index
    %15 = vector.load %arg5[%c1_12, %c0_13, %c0_14] : memref<2x8x256xf32, #tpu.memory_space<vmem>>, vector<1x8x256xf32>
    %16 = vector.shape_cast %15 : vector<1x8x256xf32> to vector<8x256xf32>
    %17 = vector.shape_cast %14 : vector<8x256xf32> to vector<1x8x256xf32>
    tpu.vector_store %arg5[%c1_12, %c0_13, %c0_14], %17 {strides = array<i32>} : memref<2x8x256xf32, #tpu.memory_space<vmem>>, vector<1x8x256xf32>,
    return
  }
  func.func @transform_0(%arg0: i32, %arg1: i32) -> (i32, i32, i32) {
    %c0_i32 = arith.constant 0 : i32
    %c0_i32_0 = arith.constant 0 : i32
    return %arg0, %c0_i32, %arg1 : i32, i32, i32
  }
  func.func @transform_1(%arg0: i32, %arg1: i32) -> (i32, i32) {
    %c0_i32 = arith.constant 0 : i32
    %c0_i32_0 = arith.constant 0 : i32
    %c0_i32_1 = arith.constant 0 : i32
    return %c0_i32, %c0_i32_0 : i32, i32
  }
  func.func @transform_2(%arg0: i32, %arg1: i32) -> (i32, i32) {
    %c0_i32 = arith.constant 0 : i32
    %c0_i32_0 = arith.constant 0 : i32
    %c0_i32_1 = arith.constant 0 : i32
    return %c0_i32, %c0_i32_0 : i32, i32
  }
  func.func @transform_3(%arg0: i32, %arg1: i32) -> (i32, i32, i32) {
    %c0_i32 = arith.constant 0 : i32
    %c0_i32_0 = arith.constant 0 : i32
    return %arg0, %c0_i32, %arg1 : i32, i32, i32
  }
}

</mosaic_0001>

<llo_original>
// kernel: tpu_custom_call.1
$region0: #{tpu_custom_call.1}
  #allocation0 [shape = 'u32[]', space=smem, size = 0x4, offset = 0x4, fixed_abs, tag = 'smem constant byte address 0x4 - core index']
  #allocation1 [shape = 'u32[144,128]{1,0:T(1,128)}', space=vmem, size = 0x12000, scoped, tag = 'internal scratch']
  %s0 = inlined_call_operand.vmem [shape: f32[2,4,256], index: 0, kind: input, shape index: {}]
  %s1 = inlined_call_operand.vmem [shape: f32[8,4], index: 1, kind: input, shape index: {}]
  %s2 = inlined_call_operand.vmem [shape: f32[8,1], index: 2, kind: input, shape index: {}]
  %s3 = inlined_call_operand.hbm [shape: f32[2,8,256], index: 3, kind: output, shape index: {}]
  %s4 = sld [smem:[#allocation0]]
  $region22: #{tpu_custom_call.1} parent=0
    _
  %s6 = ssub.s32 1, %s4
  %s7 = scalar_select 0, %s6, %s4
  $region1: #{tpu_custom_call.1} parent=0
    #allocation2 [shape = 'u8[16384]{0}', space=vmem, size = 0x4000, scoped, tag = 'output window, operand 0, single buffered']
    #allocation3 [shape = 's32[1]{0}', space=sflag, size = 0x4, scoped, tag = 'scoped memory for tpu_custom_call.1']
    %8 = vsyncpa [#allocation3], 0
    // Predicated region
    $region2: #{tpu_custom_call.1} parent=1 // pred_check
      _
    $region3: #{tpu_custom_call.1} parent=1 // pred_check_branch
      %10 = sbr.rel (0) target = $region5
    $region4: #{tpu_custom_call.1} parent=1 // pred_region
      _
    $region5: #{tpu_custom_call.1} parent=1 // pred_fallthru
      _
    // Predicated region
    $region6: #{tpu_custom_call.1} parent=1 // pred_check
      _
    $region7: #{tpu_custom_call.1} parent=1 // pred_check_branch
      %12 = sbr.rel (0) target = $region9
    $region8: #{tpu_custom_call.1} parent=1 // pred_region
      _
    $region9: #{tpu_custom_call.1} parent=1 // pred_fallthru
      _
    // Predicated region
    $region10: #{tpu_custom_call.1} parent=1 // pred_check
      _
    $region11: #{tpu_custom_call.1} parent=1 // pred_check_branch
      %14 = sbr.rel (0) target = $region13
    $region12: #{tpu_custom_call.1} parent=1 // pred_region
      _
    $region13: #{tpu_custom_call.1} parent=1 // pred_fallthru
      _
    %v15 = vld [vmem:[%s1] sm:$0xff]
    %v16 = vld [vmem:[%s2] sm:$0xff]
    %v17 = vld [vmem:[%s0] sm:$0xff]
    %19 = vset.pattern.permute.xlu0 0
    %20 = vperm.xlu0 %19, %v16
    %v21 = vpop.permute.xlu0 %20
    %v24 = vcombine.high %v17, %v17
    %vm25 = vcmask 31744
    %v27 = vsel %vm25, %v15, 0
    %vm29 = vcmask 1043456
    %v30 = vsel %vm29, %v17, 0
    %v32 = vsel %vm29, %v24, 0
    %34 = vmatprep.subr.mxu0 %v32
    %35 = vmatpush1.msra.mxu0 %v30
    %36 = vmatprep.subr.mxu0 0.0
    %37 = vmatpush1.msra.mxu0 0.0
    %38 = vmatprep.subr.mxu0 0.0
    %39 = vmatpush1.msra.mxu0 0.0
    %40 = vmatprep.subr.mxu0 0.0
    %41 = vmatpush1.msra.mxu0 0.0
    %42 = vmatprep.subr.mxu0 0.0
    %43 = vmatpush1.msra.mxu0 0.0
    %44 = vmatprep.subr.mxu0 0.0
    %45 = vmatpush1.msra.mxu0 0.0
    %46 = vmatprep.subr.mxu0 0.0
    %47 = vmatpush1.msra.mxu0 0.0
    %48 = vmatprep.subr.mxu0 0.0
    %49 = vmatpush1.msra.mxu0 0.0
    %50 = vmatprep.subr.mxu0 0.0
    %51 = vmatpush1.msra.mxu0 0.0
    %52 = vmatprep.subr.mxu0 0.0
    %53 = vmatpush1.msra.mxu0 0.0
    %54 = vmatprep.subr.mxu0 0.0
    %55 = vmatpush1.msra.mxu0 0.0
    %56 = vmatprep.subr.mxu0 0.0
    %57 = vmatpush1.msra.mxu0 0.0
    %58 = vmatprep.subr.mxu0 0.0
    %59 = vmatpush1.msra.mxu0 0.0
    %60 = vmatprep.subr.mxu0 0.0
    %61 = vmatpush1.msra.mxu0 0.0
    %62 = vmatprep.subr.mxu0 0.0
    %63 = vmatpush1.msra.mxu0 0.0
    %64 = vmatprep.subr.mxu0 0.0
    %65 = vmatpush1.msra.mxu0 0.0
    %66 = vmatprep.subr.mxu0 0.0
    %67 = vmatpush1.msra.mxu0 0.0
    %68 = vmatprep.subr.mxu0 0.0
    %69 = vmatpush1.msra.mxu0 0.0
    %70 = vmatprep.subr.mxu0 0.0
    %71 = vmatpush1.msra.mxu0 0.0
    %72 = vmatprep.subr.mxu0 0.0
    %73 = vmatpush1.msra.mxu0 0.0
    %74 = vmatprep.subr.mxu0 0.0
    %75 = vmatpush1.msra.mxu0 0.0
    %76 = vmatprep.subr.mxu0 0.0
    %77 = vmatpush1.msra.mxu0 0.0
    %78 = vmatprep.subr.mxu0 0.0
    %79 = vmatpush1.msra.mxu0 0.0
    %80 = vmatprep.subr.mxu0 0.0
    %81 = vmatpush1.msra.mxu0 0.0
    %82 = vmatprep.subr.mxu0 0.0
    %83 = vmatpush1.msra.mxu0 0.0
    %84 = vmatprep.subr.mxu0 0.0
    %85 = vmatpush1.msra.mxu0 0.0
    %86 = vmatprep.subr.mxu0 0.0
    %87 = vmatpush1.msra.mxu0 0.0
    %88 = vmatprep.subr.mxu0 0.0
    %89 = vmatpush1.msra.mxu0 0.0
    %90 = vmatprep.subr.mxu0 0.0
    %91 = vmatpush1.msra.mxu0 0.0
    %92 = vmatprep.subr.mxu0 0.0
    %93 = vmatpush1.msra.mxu0 0.0
    %94 = vmatprep.subr.mxu0 0.0
    %95 = vmatpush1.msra.mxu0 0.0
    %96 = vmatprep.subr.mxu0 0.0
    %97 = vmatpush1.msra.mxu0 0.0
    %98 = vmatprep.mubr.f32.mxu0 0.0
    %99 = vmatmul.mubr.f32.gmra.mrb[0].mxu0 %v27
    %v100 = vpop.f32.mrb[0].mxu0
    %v101 = vadd.f32 %v21, %v100
    %v102 = vpop.f32.mrb[0].mxu0
    %v103 = vadd.f32 %v21, %v102
    %104 = vdwg.mxu0
    %105 = vst [vmem:[#allocation2] sm:$0xff] %v101
    %106 = vst [vmem:[#allocation2 + $0x8] sm:$0xff] %v103
    %s107 = scalar_lea.vmem %s0, 8
    %v108 = vld [vmem:[%s107] sm:$0xff]
    %v110 = vcombine.high %v108, %v108
    %v111 = vsel %vm29, %v108, 0
    %v113 = vsel %vm29, %v110, 0
    %115 = vmatprep.subr.mxu0 %v113
    %116 = vmatpush1.msra.mxu0 %v111
    %117 = vmatprep.subr.mxu0 0.0
    %118 = vmatpush1.msra.mxu0 0.0
    %119 = vmatprep.subr.mxu0 0.0
    %120 = vmatpush1.msra.mxu0 0.0
    %121 = vmatprep.subr.mxu0 0.0
    %122 = vmatpush1.msra.mxu0 0.0
    %123 = vmatprep.subr.mxu0 0.0
    %124 = vmatpush1.msra.mxu0 0.0
    %125 = vmatprep.subr.mxu0 0.0
    %126 = vmatpush1.msra.mxu0 0.0
    %127 = vmatprep.subr.mxu0 0.0
    %128 = vmatpush1.msra.mxu0 0.0
    %129 = vmatprep.subr.mxu0 0.0
    %130 = vmatpush1.msra.mxu0 0.0
    %131 = vmatprep.subr.mxu0 0.0
    %132 = vmatpush1.msra.mxu0 0.0
    %133 = vmatprep.subr.mxu0 0.0
    %134 = vmatpush1.msra.mxu0 0.0
    %135 = vmatprep.subr.mxu0 0.0
    %136 = vmatpush1.msra.mxu0 0.0
    %137 = vmatprep.subr.mxu0 0.0
    %138 = vmatpush1.msra.mxu0 0.0
    %139 = vmatprep.subr.mxu0 0.0
    %140 = vmatpush1.msra.mxu0 0.0
    %141 = vmatprep.subr.mxu0 0.0
    %142 = vmatpush1.msra.mxu0 0.0
    %143 = vmatprep.subr.mxu0 0.0
    %144 = vmatpush1.msra.mxu0 0.0
    %145 = vmatprep.subr.mxu0 0.0
    %146 = vmatpush1.msra.mxu0 0.0
    %147 = vmatprep.subr.mxu0 0.0
    %148 = vmatpush1.msra.mxu0 0.0
    %149 = vmatprep.subr.mxu0 0.0
    %150 = vmatpush1.msra.mxu0 0.0
    %151 = vmatprep.subr.mxu0 0.0
    %152 = vmatpush1.msra.mxu0 0.0
    %153 = vmatprep.subr.mxu0 0.0
    %154 = vmatpush1.msra.mxu0 0.0
    %155 = vmatprep.subr.mxu0 0.0
    %156 = vmatpush1.msra.mxu0 0.0
    %157 = vmatprep.subr.mxu0 0.0
    %158 = vmatpush1.msra.mxu0 0.0
    %159 = vmatprep.subr.mxu0 0.0
    %160 = vmatpush1.msra.mxu0 0.0
    %161 = vmatprep.subr.mxu0 0.0
    %162 = vmatpush1.msra.mxu0 0.0
    %163 = vmatprep.subr.mxu0 0.0
    %164 = vmatpush1.msra.mxu0 0.0
    %165 = vmatprep.subr.mxu0 0.0
    %166 = vmatpush1.msra.mxu0 0.0
    %167 = vmatprep.subr.mxu0 0.0
    %168 = vmatpush1.msra.mxu0 0.0
    %169 = vmatprep.subr.mxu0 0.0
    %170 = vmatpush1.msra.mxu0 0.0
    %171 = vmatprep.subr.mxu0 0.0
    %172 = vmatpush1.msra.mxu0 0.0
    %173 = vmatprep.subr.mxu0 0.0
    %174 = vmatpush1.msra.mxu0 0.0
    %175 = vmatprep.subr.mxu0 0.0
    %176 = vmatpush1.msra.mxu0 0.0
    %177 = vmatprep.subr.mxu0 0.0
    %178 = vmatpush1.msra.mxu0 0.0
    %179 = vmatprep.mubr.f32.mxu0 0.0
    %180 = vmatmul.mubr.f32.gmra.mrb[0].mxu0 %v27
    %v181 = vpop.f32.mrb[0].mxu0
    %v182 = vadd.f32 %v21, %v181
    %v183 = vpop.f32.mrb[0].mxu0
    %v184 = vadd.f32 %v21, %v183
    %185 = vdwg.mxu0
    %s186 = scalar_lea.vmem [#allocation2], 16
    %187 = vst [vmem:[%s186] sm:$0xff] %v182
    %188 = vst [vmem:[%s186 + $0x8] sm:$0xff] %v184
    // Predicated region
    $region14: #{tpu_custom_call.1} parent=1 // pred_check
      _
    $region15: #{tpu_custom_call.1} parent=1 // pred_check_branch
      %190 = sbr.rel (0) target = $region17
    $region16: #{tpu_custom_call.1} parent=1 // pred_region
      %s192 = ssub.s32 512, 512
      %193 = vsyncadd [#allocation3], %s192
      %s194 = sshll.u32 [#allocation2], 4
      %s195 = int_to_ptr.vmem [resolvable:$true] %s194
      %200 = dma.vmem_to_hbm [thread:$0]  %s195, 512, %s3, [#allocation3], 256, 256, 16
    $region17: #{tpu_custom_call.1} parent=1 // pred_fallthru
      _
    // Predicated region
    $region18: #{tpu_custom_call.1} parent=1 // pred_check
      _
    $region19: #{tpu_custom_call.1} parent=1 // pred_check_branch
      %202 = sbr.rel (0) target = $region21
    $region20: #{tpu_custom_call.1} parent=1 // pred_region
      %203 = dma.done [#allocation3], 512
    $region21: #{tpu_custom_call.1} parent=1 // pred_fallthru
      _
    %204 = vsyncpa [#allocation3], 1

</llo_original>
